<compile_context>
chip_gen: v5e
topology: v5e:2x2
jax: 0.10.0
libtpu: 0.0.40
codegen_flags: <defaults>
</compile_context>

<pallas_src>
import functools

import jax
import jax.numpy as jnp
from jax.experimental import pallas as pl
from jax.experimental.pallas import tpu as pltpu


LANES = 128
ACC_SUB = 8  # f32 accumulator sublanes (accumulator is always f32)


def _tpu_config():
    """Returns (block_rows, num_cores, input_buffers, vmem_limit_bytes)."""
    kind = ""
    try:
        kind = getattr(jax.devices()[0], "device_kind", "") or ""
        kind = kind.lower()
    except Exception:  # pragma: no cover - conservative fallback
        pass
    if "v7" in kind or "7x" in kind:
        # 2 TensorCores, 64 MiB physical VMEM (32 MiB scoped default), 3.2 TB/s HBM:
        # 8192 rows f32 => 4 MiB/input block; 2 inputs x 3 buffers = 24 MiB < 48 MiB cap.
        return 8192, 2, 3, 48 * 1024 * 1024
    if "v6" in kind:
        # 1 TensorCore, 128 MiB physical VMEM, 1.4 TB/s HBM.
        return 8192, 1, 2, 64 * 1024 * 1024
    if "v5" in kind:
        # v5e: 1 TensorCore, 16 MiB scoped default (raise it; physical is 128 MiB).
        return 4096, 1, 2, 64 * 1024 * 1024
    # Unknown chip: conservative defaults, leave scoped-VMEM limit alone.
    return 4096, 1, 2, None


def _partial_sum(x, br):
    # (br,128) f32 -> (8,128): the reshape is tile-aligned (br % 8 == 0, free) and
    # the axis-0 sum is pure VPU vreg-to-vreg adds (no cross-lane work per step).
    return jnp.sum(x.reshape(br // ACC_SUB, ACC_SUB, LANES), axis=0)


def _l1_kernel(a_ref, p_ref, o_ref, *, rows, br, spc, two_d, mask_needed):
    if two_d:
        step = pl.program_id(1)
        blk = pl.program_id(0) * spc + step      # logical block id
    else:
        step = pl.program_id(0)
        blk = step

    @pl.when(step == 0)
    def _():
        o_ref[...] = jnp.zeros_like(o_ref)

    absdiff = jnp.abs(p_ref[...].astype(jnp.float32) - a_ref[...].astype(jnp.float32))

    if mask_needed:
        row_start = blk * br

        @pl.when(row_start + br <= rows)          # common unmasked fast path
        def _():
            o_ref[...] += _partial_sum(absdiff, br)[None]

        @pl.when(row_start + br > rows)           # overhang block / spare clamped step
        def _():
            row_ids = jax.lax.broadcasted_iota(jnp.int32, (br, 1), 0) + row_start
            masked = jnp.where(row_ids < rows, absdiff, 0.0)
            o_ref[...] += _partial_sum(masked, br)[None]
    else:
        o_ref[...] += _partial_sum(absdiff, br)[None]


def _input_spec(br, in_map, buffers):
    if buffers != 2 and hasattr(pl, "Buffered"):
        try:
            return pl.BlockSpec((br, LANES), in_map, pipeline_mode=pl.Buffered(buffers))
        except TypeError:  # older BlockSpec signature: fall back to default depth 2
            pass
    return pl.BlockSpec((br, LANES), in_map)


def global_align_loss(anchor, positive, *, block_rows=None):
    """Pallas equivalent of F.l1_loss(positive, anchor) (mean reduction)."""
    assert anchor.shape == positive.shape, "anchor/positive must match"
    n_elem = anchor.size
    assert n_elem > 0, "empty input"

    cfg_rows, num_cores, input_buffers, vmem_limit = _tpu_config()
    if block_rows is None:
        block_rows = cfg_rows

    # Flatten: contiguous reshape == bitcast, no HBM traffic.
    a = anchor.reshape(-1)
    p = positive.reshape(-1)

    # dtype-aware packed tile: 8 sublanes for 32-bit, 16 for bf16/fp16, 32 for int8/fp8.
    itemsize = min(jnp.dtype(anchor.dtype).itemsize, jnp.dtype(positive.dtype).itemsize)
    sub = max(ACC_SUB, 32 // max(1, itemsize))
    chunk = sub * LANES

    n_aligned = (n_elem // chunk) * chunk
    tail = n_elem - n_aligned

    # Tail (< chunk elements) reduced in the wrapper; no jnp.pad, so misaligned
    # sizes no longer cost an extra full read+write of both inputs.
    tail_sum = jnp.float32(0.0)
    if tail:
        tail_sum = jnp.sum(
            jnp.abs(p[n_aligned:].astype(jnp.float32) - a[n_aligned:].astype(jnp.float32)))

    if n_aligned == 0:
        # Smaller than one packed row-chunk: pure JAX is the right tool.
        return tail_sum / jnp.float32(n_elem)

    rows = n_aligned // LANES                     # always a multiple of `sub`
    a2 = a[:n_aligned].reshape(rows, LANES)       # aligned case: slice is a no-op
    p2 = p[:n_aligned].reshape(rows, LANES)

    # Row-block size: multiple of the packed tile, never exceeding the row count.
    br = max(sub, min(int(block_rows), rows))
    br = (br // sub) * sub
    nblk = -(-rows // br)                         # total row blocks
    num_cores = max(1, min(num_cores, nblk))      # never more cores than blocks
    spc = -(-nblk // num_cores)                   # grid steps per core
    last_blk = nblk - 1
    two_d = num_cores > 1
    # Mask only needed when a block overhangs the slab or a core has a spare step.
    mask_needed = (nblk * br != rows) or (num_cores * spc != nblk)

    if two_d:
        grid = (num_cores, spc)

        def in_map(c, i):
            # Clamp so the DMA never targets a block wholly past the slab end; the
            # in-kernel mask (keyed on the *logical* block id) zeroes its rows.
            return (jnp.minimum(c * spc + i, last_blk), 0)

        out_spec = pl.BlockSpec((1, ACC_SUB, LANES), lambda c, i: (c, 0, 0))
        # TODO(synk): verify with xprof that "parallel" actually shards axis 0 across
        # both v7x TensorCores; if not, switch to pltpu.CORE_PARALLEL / pl.core_map.
        dims = ("parallel", "arbitrary")
    else:
        grid = (nblk,)

        def in_map(i):
            return (i, 0)

        out_spec = pl.BlockSpec((1, ACC_SUB, LANES), lambda i: (0, 0, 0))
        dims = ("arbitrary",)

    in_specs = [
        _input_spec(br, in_map, input_buffers),
        _input_spec(br, in_map, input_buffers),
    ]

    cp_kwargs = dict(dimension_semantics=dims)
    if vmem_limit is not None:
        cp_kwargs["vmem_limit_bytes"] = int(vmem_limit)

    cost = pl.CostEstimate(
        flops=3 * n_aligned,
        transcendentals=0,
        bytes_accessed=2 * n_aligned * itemsize + num_cores * ACC_SUB * LANES * 4,
    )

    partials = pl.pallas_call(
        functools.partial(_l1_kernel, rows=rows, br=br, spc=spc,
                          two_d=two_d, mask_needed=mask_needed),
        out_shape=jax.ShapeDtypeStruct((num_cores, ACC_SUB, LANES), jnp.float32),
        grid_spec=pltpu.PrefetchScalarGridSpec(
            num_scalar_prefetch=0,
            grid=grid,
            in_specs=in_specs,
            out_specs=out_spec,
        ),
        compiler_params=pltpu.CompilerParams(**cp_kwargs),
        cost_estimate=cost,
    )(a2, p2)

    # Single tiny cross-lane reduce + mean normalization outside the hot loop.
    return (jnp.sum(partials) + tail_sum) / jnp.float32(n_elem)


if __name__ == "__main__":
    key = jax.random.PRNGKey(0)
    k1, k2, k3, k4 = jax.random.split(key, 4)

    # GlobalAlignLoss has no parameters; forward just takes (anchor, positive).
    anchor = jax.random.normal(k1, (2, 4, 16, 16), dtype=jnp.float32)
    positive = jax.random.normal(k2, (2, 4, 16, 16), dtype=jnp.float32)

    loss = jax.block_until_ready(global_align_loss(anchor, positive))
    ref = jnp.mean(jnp.abs(positive - anchor))
    assert jnp.allclose(loss, ref, rtol=1e-5, atol=1e-6), (loss, ref)

    # Misaligned element count (3*5*7*11 = 1155) exercises the no-pad tail path.
    a_odd = jax.random.normal(k3, (3, 5, 7, 11), dtype=jnp.float32)
    p_odd = jax.random.normal(k4, (3, 5, 7, 11), dtype=jnp.float32)
    loss_odd = jax.block_until_ready(global_align_loss(a_odd, p_odd))
    ref_odd = jnp.mean(jnp.abs(p_odd - a_odd))
    assert jnp.allclose(loss_odd, ref_odd, rtol=1e-5, atol=1e-6), (loss_odd, ref_odd)

    print("KERNEL_OK")
</pallas_src>

<mosaic_0001>
module attributes {stable_mosaic.version = 11 : i64} {
  func.func @_l1_kernel(%arg0: i32, %arg1: memref<16x128xf32, #tpu.memory_space<vmem>>, %arg2: memref<16x128xf32, #tpu.memory_space<vmem>>, %arg3: memref<1x8x128xf32, #tpu.memory_space<vmem>>) attributes {dimension_semantics = [#tpu.dimension_semantics<arbitrary>], iteration_bounds = array<i64: 1>, scalar_prefetch = 0 : i64, scratch_operands = 0 : i64, tpu.core_type = #tpu.core_type<tc>, window_params = [{transform_indices = @transform_0, window_bounds = array<i64: 16, 128>}, {transform_indices = @transform_1, window_bounds = array<i64: 16, 128>}, {pipeline_mode = #tpu.pipeline_mode<synchronous>, transform_indices = @transform_2, window_bounds = array<i64: 1, 8, 128>}]} {
    %c0_i32 = arith.constant 0 : i32
    %0 = arith.cmpi eq, %arg0, %c0_i32 : i32
    %1 = arith.extui %0 : i1 to i32
    %c0_i32_0 = arith.constant 0 : i32
    %2 = arith.cmpi ne, %1, %c0_i32_0 : i32
    scf.if %2 {
      %cst_10 = arith.constant 0.000000e+00 : f32
      %13 = vector.broadcast %cst_10 : f32 to vector<1x8x128xf32>
      %c0_11 = arith.constant 0 : index
      %c0_12 = arith.constant 0 : index
      %c0_13 = arith.constant 0 : index
      %14 = vector.load %arg3[%c0_11, %c0_12, %c0_13] : memref<1x8x128xf32, #tpu.memory_space<vmem>>, vector<1x8x128xf32>
      tpu.vector_store %arg3[%c0_11, %c0_12, %c0_13], %13 {strides = array<i32>} : memref<1x8x128xf32, #tpu.memory_space<vmem>>, vector<1x8x128xf32>,
    } else {
    }
    %c0 = arith.constant 0 : index
    %c0_1 = arith.constant 0 : index
    %3 = vector.load %arg2[%c0, %c0_1] : memref<16x128xf32, #tpu.memory_space<vmem>>, vector<16x128xf32>
    %c0_2 = arith.constant 0 : index
    %c0_3 = arith.constant 0 : index
    %4 = vector.load %arg1[%c0_2, %c0_3] : memref<16x128xf32, #tpu.memory_space<vmem>>, vector<16x128xf32>
    %5 = arith.subf %3, %4 : vector<16x128xf32>
    %6 = math.absf %5 : vector<16x128xf32>
    %c0_4 = arith.constant 0 : index
    %c0_5 = arith.constant 0 : index
    %c0_6 = arith.constant 0 : index
    %7 = vector.load %arg3[%c0_4, %c0_5, %c0_6] : memref<1x8x128xf32, #tpu.memory_space<vmem>>, vector<1x8x128xf32>
    %8 = vector.shape_cast %6 : vector<16x128xf32> to vector<2x8x128xf32>
    %cst = arith.constant dense<0.000000e+00> : vector<8x128xf32>
    %9 = vector.multi_reduction <add>, %8, %cst [0] : vector<2x8x128xf32> to vector<8x128xf32>
    %10 = vector.shape_cast %9 : vector<8x128xf32> to vector<1x8x128xf32>
    %11 = arith.addf %7, %10 : vector<1x8x128xf32>
    %c0_7 = arith.constant 0 : index
    %c0_8 = arith.constant 0 : index
    %c0_9 = arith.constant 0 : index
    %12 = vector.load %arg3[%c0_7, %c0_8, %c0_9] : memref<1x8x128xf32, #tpu.memory_space<vmem>>, vector<1x8x128xf32>
    tpu.vector_store %arg3[%c0_7, %c0_8, %c0_9], %11 {strides = array<i32>} : memref<1x8x128xf32, #tpu.memory_space<vmem>>, vector<1x8x128xf32>,
    return
  }
  func.func @transform_0(%arg0: i32) -> (i32, i32) {
    %c0_i32 = arith.constant 0 : i32
    %c0_i32_0 = arith.constant 0 : i32
    return %arg0, %c0_i32 : i32, i32
  }
  func.func @transform_1(%arg0: i32) -> (i32, i32) {
    %c0_i32 = arith.constant 0 : i32
    %c0_i32_0 = arith.constant 0 : i32
    return %arg0, %c0_i32 : i32, i32
  }
  func.func @transform_2(%arg0: i32) -> (i32, i32, i32) {
    %c0_i32 = arith.constant 0 : i32
    %c0_i32_0 = arith.constant 0 : i32
    %c0_i32_1 = arith.constant 0 : i32
    %c0_i32_2 = arith.constant 0 : i32
    return %c0_i32, %c0_i32_0, %c0_i32_1 : i32, i32, i32
  }
}

</mosaic_0001>

<llo_original>
// kernel: tpu_custom_call.1
$region0: #{tpu_custom_call.1}
  #allocation0 [shape = 'u32[]', space=smem, size = 0x4, offset = 0x4, fixed_abs, tag = 'smem constant byte address 0x4 - core index']
  #allocation1 [shape = 'u32[72,128]{1,0:T(1,128)}', space=vmem, size = 0x9000, scoped, tag = 'internal scratch']
  %s0 = inlined_call_operand.hbm [shape: f32[16,128], index: 0, kind: input, shape index: {}]
  %s1 = inlined_call_operand.hbm [shape: f32[16,128], index: 1, kind: input, shape index: {}]
  %s2 = inlined_call_operand.hbm [shape: f32[1,8,128], index: 2, kind: output, shape index: {}]
  %s3 = sld [smem:[#allocation0]]
  $region30: #{tpu_custom_call.1} parent=0
    _
  %s5 = ssub.s32 1, %s3
  %s6 = scalar_select 0, %s5, %s3
  $region1: #{tpu_custom_call.1} parent=0
    #allocation2 [shape = 'u8[8192]{0}', space=vmem, size = 0x2000, scoped, tag = 'input window, operand 0, single buffered']
    #allocation3 [shape = 's32[1]{0}', space=sflag, size = 0x4, scoped, tag = 'scoped memory for tpu_custom_call.1']
    #allocation4 [shape = 's32[1]{0}', space=sflag, size = 0x4, scoped, tag = 'scoped memory for tpu_custom_call.1']
    #allocation5 [shape = 'u8[8192]{0}', space=vmem, size = 0x2000, scoped, tag = 'input window, operand 1, single buffered']
    #allocation6 [shape = 's32[1]{0}', space=sflag, size = 0x4, scoped, tag = 'scoped memory for tpu_custom_call.1']
    #allocation7 [shape = 'u8[4096]{0}', space=vmem, size = 0x1000, scoped, tag = 'output window, operand 0, single buffered']
    %7 = vsyncpa [#allocation3], 0
    %8 = vsyncpa [#allocation6], 0
    %9 = vsyncpa [#allocation4], 0
    // Predicated region
    $region2: #{tpu_custom_call.1} parent=1 // pred_check
      _
    $region3: #{tpu_custom_call.1} parent=1 // pred_check_branch
      %11 = sbr.rel (0) target = $region5
    $region4: #{tpu_custom_call.1} parent=1 // pred_region
      %13 = vsyncadd [#allocation3], 0
      %s14 = sshll.u32 %s0, 4
      %s15 = int_to_ptr.hbm [resolvable:$true] %s14
      %s16 = sshll.u32 [#allocation2], 4
      %s17 = int_to_ptr.vmem [resolvable:$true] %s16
      %22 = dma.hbm_to_vmem [thread:$0]  %s15, 256, %s17, [#allocation3], 128, 128, 8
    $region5: #{tpu_custom_call.1} parent=1 // pred_fallthru
      _
    // Predicated region
    $region6: #{tpu_custom_call.1} parent=1 // pred_check
      _
    $region7: #{tpu_custom_call.1} parent=1 // pred_check_branch
      %24 = sbr.rel (0) target = $region9
    $region8: #{tpu_custom_call.1} parent=1 // pred_region
      %26 = vsyncadd [#allocation6], 0
      %s27 = sshll.u32 %s1, 4
      %s28 = int_to_ptr.hbm [resolvable:$true] %s27
      %s29 = sshll.u32 [#allocation5], 4
      %s30 = int_to_ptr.vmem [resolvable:$true] %s29
      %35 = dma.hbm_to_vmem [thread:$0]  %s28, 256, %s30, [#allocation6], 128, 128, 8
    $region9: #{tpu_custom_call.1} parent=1 // pred_fallthru
      _
    // Predicated region
    $region10: #{tpu_custom_call.1} parent=1 // pred_check
      _
    $region11: #{tpu_custom_call.1} parent=1 // pred_check_branch
      %37 = sbr.rel (0) target = $region13
    $region12: #{tpu_custom_call.1} parent=1 // pred_region
      %39 = dma.done [#allocation3], 256
    $region13: #{tpu_custom_call.1} parent=1 // pred_fallthru
      _
    // Predicated region
    $region14: #{tpu_custom_call.1} parent=1 // pred_check
      _
    $region15: #{tpu_custom_call.1} parent=1 // pred_check_branch
      %41 = sbr.rel (0) target = $region17
    $region16: #{tpu_custom_call.1} parent=1 // pred_region
      %43 = dma.done [#allocation6], 256
    $region17: #{tpu_custom_call.1} parent=1 // pred_fallthru
      _
    %p44 = scmp.eq.s32.totalorder 0, 0
    // Predicated region
    $region18: #{tpu_custom_call.1} parent=1 // pred_check
      %p45 = pneg %p44
    $region19: #{tpu_custom_call.1} parent=1 // pred_check_branch
      %47 = sbr.rel (%p45) target = $region21
    $region20: #{tpu_custom_call.1} parent=1 // pred_region
      %48 = vst [vmem:[#allocation7] sm:$0xff] 0.0
    $region21: #{tpu_custom_call.1} parent=1 // pred_fallthru
      _
    %v49 = vld [vmem:[#allocation5] sm:$0xff]
    %v50 = vld [vmem:[#allocation5 + $0x8] sm:$0xff]
    %v51 = vld [vmem:[#allocation2] sm:$0xff]
    %v52 = vld [vmem:[#allocation2 + $0x8] sm:$0xff]
    %v53 = vsub.f32 %v49, %v51
    %v54 = vsub.f32 %v50, %v52
    %v55 = vand.u32 2147483647, %v53
    %v56 = vand.u32 2147483647, %v54
    %v57 = vld [vmem:[#allocation7] sm:$0xff]
    %v58 = vadd.f32 %v55, %v56
    %v59 = vadd.f32 %v57, %v58
    %60 = vst [vmem:[#allocation7] sm:$0xff] %v59
    // Predicated region
    $region22: #{tpu_custom_call.1} parent=1 // pred_check
      _
    $region23: #{tpu_custom_call.1} parent=1 // pred_check_branch
      %62 = sbr.rel (0) target = $region25
    $region24: #{tpu_custom_call.1} parent=1 // pred_region
      %64 = vsyncadd [#allocation4], 0
      %s66 = sshll.u32 [#allocation7], 4
      %s67 = int_to_ptr.vmem [resolvable:$true] %s66
      %s68 = sshll.u32 %s2, 4
      %s69 = int_to_ptr.hbm [resolvable:$true] %s68
      %71 = dma.vmem_to_hbm [thread:$0]  %s67, 128, %s69, [#allocation4]
    $region25: #{tpu_custom_call.1} parent=1 // pred_fallthru
      _
    // Predicated region
    $region26: #{tpu_custom_call.1} parent=1 // pred_check
      _
    $region27: #{tpu_custom_call.1} parent=1 // pred_check_branch
      %73 = sbr.rel (0) target = $region29
    $region28: #{tpu_custom_call.1} parent=1 // pred_region
      %75 = dma.done [#allocation4], 128
    $region29: #{tpu_custom_call.1} parent=1 // pred_fallthru
      _
    %76 = vsyncpa [#allocation3], 1
    %77 = vsyncpa [#allocation6], 1
    %78 = vsyncpa [#allocation4], 1

</llo_original>
